<compile_context>
chip_gen: v7x
topology: tpu7x:2x2x1
jax: 0.10.0
libtpu: 0.0.40
codegen_flags: <defaults>
</compile_context>

<pallas_src>
import functools

import jax
import jax.numpy as jnp
from jax.experimental import pallas as pl
from jax.experimental.pallas import tpu as pltpu


def _conv_bn_act_kernel(x_ref, w_ref, shift_ref, o_ref, *,
                        th, ow, cin, cout_pad, kh, kw, stride,
                        negative_slope, activation):
    # x_ref:     (1, Hp, Wp, Cin)        f32 padded input, one batch element
    # w_ref:     (KH*KW*Cin, Cout_pad)   bf16, BN scale already folded in
    # shift_ref: (1, Cout_pad)           f32 folded BN shift
    # o_ref:     (1, TH, OW, Cout_pad)   f32 output row band (lane-dense last dim)
    t = pl.program_id(1)
    row0 = pl.multiple_of(t * th * stride, th * stride)

    # Gather the kh*kw conv taps directly from the ref (plain / strided offset
    # loads, no value-level slice copies) and fold them into the contraction
    # axis (im2col): K = kh*kw*cin, single MXU matmul.
    taps = []
    for ih in range(kh):
        for iw in range(kw):
            if stride == 1:
                hs = pl.ds(row0 + ih, th)
                ws = pl.ds(iw, ow)
            else:
                hs = pl.ds(row0 + ih, th, stride)
                ws = pl.ds(iw, ow, stride)
            taps.append(x_ref[0, hs, ws, :])            # (TH, OW, Cin) f32

    patch = jnp.concatenate(taps, axis=-1)              # (TH, OW, KH*KW*Cin)
    patch = patch.reshape(th * ow, kh * kw * cin)       # (M, K)

    acc = jnp.dot(patch.astype(jnp.bfloat16), w_ref[...],
                  preferred_element_type=jnp.float32)   # (M, Cout_pad) f32

    y = acc + shift_ref[0]                              # BN shift (scale folded into W)
    if activation:
        y = jnp.where(y > 0, y, negative_slope * y)     # LeakyReLU(0.1), f32 epilogue
    o_ref[...] = y.reshape(1, th, ow, cout_pad).astype(o_ref.dtype)


def conv_bn_leaky(x_nchw, w_oihw, gamma, beta, running_mean, running_var, *,
                  stride=1, padding=0, eps=1e-5, negative_slope=0.1,
                  activation=True):
    """Pallas implementation of Conv(c1, c2, k, s, p): Conv2d + BN(eval) + LeakyReLU."""
    n, cin, h, w = x_nchw.shape
    cout, cin_w, kh, kw = w_oihw.shape
    assert cin == cin_w
    oh = (h + 2 * padding - kh) // stride + 1
    ow = (w + 2 * padding - kw) // stride + 1

    # ---- glue (plain JAX): BN folding, layout, padding ------------------------
    scale = (gamma / jnp.sqrt(running_var + eps)).astype(jnp.float32)   # (Cout,)
    shift = (beta - running_mean * scale).astype(jnp.float32)           # (Cout,)

    # Lane-dense output: pad Cout to a multiple of 128, slice off afterwards.
    cout_pad = ((cout + 127) // 128) * 128

    # HWIO weights with BN scale folded in, flattened to (KH*KW*Cin, Cout_pad), bf16.
    w_hwio = jnp.transpose(w_oihw, (2, 3, 1, 0)).astype(jnp.float32) * scale
    w_flat = w_hwio.reshape(kh * kw * cin, cout)
    w_flat = jnp.pad(w_flat, ((0, 0), (0, cout_pad - cout))).astype(jnp.bfloat16)
    shift_p = jnp.pad(shift, (0, cout_pad - cout)).reshape(1, cout_pad)

    # NHWC input with explicit zero padding.
    x = jnp.transpose(x_nchw, (0, 2, 3, 1)).astype(jnp.float32)
    x = jnp.pad(x, ((0, 0), (padding, padding), (padding, padding), (0, 0)))
    hp, wp = h + 2 * padding, w + 2 * padding

    # Output row-band tiling: th output rows per grid step (th | oh, th*ow ~ 128)
    # -> matmul M ~ 128 and >= 2 parallel grid steps at these shapes.
    th = 1
    for cand in range(1, oh + 1):
        if oh % cand == 0 and cand * ow <= 128:
            th = cand
    n_bands = oh // th

    kernel = functools.partial(
        _conv_bn_act_kernel,
        th=th, ow=ow, cin=cin, cout_pad=cout_pad, kh=kh, kw=kw, stride=stride,
        negative_slope=negative_slope, activation=activation)

    out_nhwc = pl.pallas_call(
        kernel,
        out_shape=jax.ShapeDtypeStruct((n, oh, ow, cout_pad), jnp.float32),
        grid_spec=pltpu.PrefetchScalarGridSpec(
            num_scalar_prefetch=0,
            grid=(n, n_bands),
            in_specs=[
                # Full padded image per batch element; same block index across the
                # row-band axis, so it is not re-fetched between consecutive bands.
                pl.BlockSpec((1, hp, wp, cin), lambda b, t: (b, 0, 0, 0)),
                pl.BlockSpec((kh * kw * cin, cout_pad), lambda b, t: (0, 0)),
                pl.BlockSpec((1, cout_pad), lambda b, t: (0, 0)),
            ],
            out_specs=pl.BlockSpec((1, th, ow, cout_pad),
                                   lambda b, t: (b, t, 0, 0)),
        ),
        compiler_params=pltpu.CompilerParams(
            dimension_semantics=("parallel", "parallel"),
            vmem_limit_bytes=32 * 1024 * 1024),
    )(x, w_flat, shift_p)

    out = out_nhwc[..., :cout]                   # drop Cout padding
    return jnp.transpose(out, (0, 3, 1, 2))      # back to NCHW


def _reference(x_nchw, w_oihw, gamma, beta, running_mean, running_var, *,
               stride, padding, eps=1e-5, negative_slope=0.1, activation=True):
    y = jax.lax.conv_general_dilated(
        x_nchw, w_oihw,
        window_strides=(stride, stride),
        padding=[(padding, padding), (padding, padding)],
        dimension_numbers=("NCHW", "OIHW", "NCHW"))
    scale = gamma / jnp.sqrt(running_var + eps)
    shift = beta - running_mean * scale
    y = y * scale[None, :, None, None] + shift[None, :, None, None]
    if activation:
        y = jnp.where(y > 0, y, negative_slope * y)
    return y


if __name__ == "__main__":
    # Conv(c1=4, c2=8, k=3, s=1, p=1)
    N, C1, H, W = 2, 4, 16, 16
    C2, K, S, P = 8, 3, 1, 1

    key = jax.random.PRNGKey(0)
    kx, kw, kg, kb, km, kv = jax.random.split(key, 6)

    x = jax.random.normal(kx, (N, C1, H, W), dtype=jnp.float32)
    w = jax.random.normal(kw, (C2, C1, K, K), dtype=jnp.float32) * 0.1
    gamma = jax.random.normal(kg, (C2,), dtype=jnp.float32) * 0.1 + 1.0
    beta = jax.random.normal(kb, (C2,), dtype=jnp.float32) * 0.1
    running_mean = jax.random.normal(km, (C2,), dtype=jnp.float32) * 0.1
    running_var = jax.nn.softplus(
        jax.random.normal(kv, (C2,), dtype=jnp.float32)) + 0.5

    out = conv_bn_leaky(x, w, gamma, beta, running_mean, running_var,
                        stride=S, padding=P)
    out = jax.block_until_ready(out)

    ref = _reference(x, w, gamma, beta, running_mean, running_var,
                     stride=S, padding=P)
    assert out.shape == (N, C2, H, W)
    # MXU runs with bf16 operands (f32 accumulation) -> bf16-level tolerance.
    max_err = float(jnp.max(jnp.abs(out - ref)))
    assert jnp.allclose(out, ref, rtol=5e-2, atol=5e-2), max_err

    print("KERNEL_OK")
</pallas_src>

<mosaic_0001>
module attributes {stable_mosaic.version = 11 : i64} {
  func.func @_conv_bn_act_kernel(%arg0: i32, %arg1: i32, %arg2: memref<1x18x18x4xf32, #tpu.memory_space<vmem>>, %arg3: memref<36x128xbf16, #tpu.memory_space<vmem>>, %arg4: memref<1x128xf32, #tpu.memory_space<vmem>>, %arg5: memref<1x8x16x128xf32, #tpu.memory_space<vmem>>) attributes {dimension_semantics = [#tpu.dimension_semantics<parallel>, #tpu.dimension_semantics<parallel>], iteration_bounds = array<i64: 2, 2>, scalar_prefetch = 0 : i64, scratch_operands = 0 : i64, tpu.core_type = #tpu.core_type<tc>, window_params = [{transform_indices = @transform_0, window_bounds = array<i64: 1, 18, 18, 4>}, {pipeline_mode = #tpu.pipeline_mode<synchronous>, transform_indices = @transform_1, window_bounds = array<i64: 36, 128>}, {pipeline_mode = #tpu.pipeline_mode<synchronous>, transform_indices = @transform_2, window_bounds = array<i64: 1, 128>}, {transform_indices = @transform_3, window_bounds = array<i64: 1, 8, 16, 128>}]} {
    %c8_i32 = arith.constant 8 : i32
    %0 = arith.muli %arg1, %c8_i32 : i32
    %c1_i32 = arith.constant 1 : i32
    %1 = arith.muli %0, %c1_i32 : i32
    %2 = tpu.assume_multiple %1, 8 : i32
    %c0_i32 = arith.constant 0 : i32
    %3 = arith.addi %2, %c0_i32 : i32
    %c0 = arith.constant 0 : index
    %4 = arith.index_cast %3 : i32 to index
    %c0_0 = arith.constant 0 : index
    %c0_1 = arith.constant 0 : index
    %5 = vector.load %arg2[%c0, %4, %c0_0, %c0_1] : memref<1x18x18x4xf32, #tpu.memory_space<vmem>>, vector<1x8x16x4xf32>
    %6 = vector.shape_cast %5 : vector<1x8x16x4xf32> to vector<8x16x4xf32>
    %c0_i32_2 = arith.constant 0 : i32
    %7 = arith.addi %2, %c0_i32_2 : i32
    %c0_3 = arith.constant 0 : index
    %8 = arith.index_cast %7 : i32 to index
    %c1 = arith.constant 1 : index
    %c0_4 = arith.constant 0 : index
    %9 = vector.load %arg2[%c0_3, %8, %c1, %c0_4] : memref<1x18x18x4xf32, #tpu.memory_space<vmem>>, vector<1x8x16x4xf32>
    %10 = vector.shape_cast %9 : vector<1x8x16x4xf32> to vector<8x16x4xf32>
    %c0_i32_5 = arith.constant 0 : i32
    %11 = arith.addi %2, %c0_i32_5 : i32
    %c0_6 = arith.constant 0 : index
    %12 = arith.index_cast %11 : i32 to index
    %c2 = arith.constant 2 : index
    %c0_7 = arith.constant 0 : index
    %13 = vector.load %arg2[%c0_6, %12, %c2, %c0_7] : memref<1x18x18x4xf32, #tpu.memory_space<vmem>>, vector<1x8x16x4xf32>
    %14 = vector.shape_cast %13 : vector<1x8x16x4xf32> to vector<8x16x4xf32>
    %c1_i32_8 = arith.constant 1 : i32
    %15 = arith.addi %2, %c1_i32_8 : i32
    %c0_9 = arith.constant 0 : index
    %16 = arith.index_cast %15 : i32 to index
    %c0_10 = arith.constant 0 : index
    %c0_11 = arith.constant 0 : index
    %17 = vector.load %arg2[%c0_9, %16, %c0_10, %c0_11] : memref<1x18x18x4xf32, #tpu.memory_space<vmem>>, vector<1x8x16x4xf32>
    %18 = vector.shape_cast %17 : vector<1x8x16x4xf32> to vector<8x16x4xf32>
    %c1_i32_12 = arith.constant 1 : i32
    %19 = arith.addi %2, %c1_i32_12 : i32
    %c0_13 = arith.constant 0 : index
    %20 = arith.index_cast %19 : i32 to index
    %c1_14 = arith.constant 1 : index
    %c0_15 = arith.constant 0 : index
    %21 = vector.load %arg2[%c0_13, %20, %c1_14, %c0_15] : memref<1x18x18x4xf32, #tpu.memory_space<vmem>>, vector<1x8x16x4xf32>
    %22 = vector.shape_cast %21 : vector<1x8x16x4xf32> to vector<8x16x4xf32>
    %c1_i32_16 = arith.constant 1 : i32
    %23 = arith.addi %2, %c1_i32_16 : i32
    %c0_17 = arith.constant 0 : index
    %24 = arith.index_cast %23 : i32 to index
    %c2_18 = arith.constant 2 : index
    %c0_19 = arith.constant 0 : index
    %25 = vector.load %arg2[%c0_17, %24, %c2_18, %c0_19] : memref<1x18x18x4xf32, #tpu.memory_space<vmem>>, vector<1x8x16x4xf32>
    %26 = vector.shape_cast %25 : vector<1x8x16x4xf32> to vector<8x16x4xf32>
    %c2_i32 = arith.constant 2 : i32
    %27 = arith.addi %2, %c2_i32 : i32
    %c0_20 = arith.constant 0 : index
    %28 = arith.index_cast %27 : i32 to index
    %c0_21 = arith.constant 0 : index
    %c0_22 = arith.constant 0 : index
    %29 = vector.load %arg2[%c0_20, %28, %c0_21, %c0_22] : memref<1x18x18x4xf32, #tpu.memory_space<vmem>>, vector<1x8x16x4xf32>
    %30 = vector.shape_cast %29 : vector<1x8x16x4xf32> to vector<8x16x4xf32>
    %c2_i32_23 = arith.constant 2 : i32
    %31 = arith.addi %2, %c2_i32_23 : i32
    %c0_24 = arith.constant 0 : index
    %32 = arith.index_cast %31 : i32 to index
    %c1_25 = arith.constant 1 : index
    %c0_26 = arith.constant 0 : index
    %33 = vector.load %arg2[%c0_24, %32, %c1_25, %c0_26] : memref<1x18x18x4xf32, #tpu.memory_space<vmem>>, vector<1x8x16x4xf32>
    %34 = vector.shape_cast %33 : vector<1x8x16x4xf32> to vector<8x16x4xf32>
    %c2_i32_27 = arith.constant 2 : i32
    %35 = arith.addi %2, %c2_i32_27 : i32
    %c0_28 = arith.constant 0 : index
    %36 = arith.index_cast %35 : i32 to index
    %c2_29 = arith.constant 2 : index
    %c0_30 = arith.constant 0 : index
    %37 = vector.load %arg2[%c0_28, %36, %c2_29, %c0_30] : memref<1x18x18x4xf32, #tpu.memory_space<vmem>>, vector<1x8x16x4xf32>
    %38 = vector.shape_cast %37 : vector<1x8x16x4xf32> to vector<8x16x4xf32>
    %39 = tpu.concatenate %6, %10, %14, %18, %22, %26, %30, %34, %38 in 2 : vector<8x16x4xf32>, vector<8x16x4xf32>, vector<8x16x4xf32>, vector<8x16x4xf32>, vector<8x16x4xf32>, vector<8x16x4xf32>, vector<8x16x4xf32>, vector<8x16x4xf32>, vector<8x16x4xf32> -> vector<8x16x36xf32>
    %40 = vector.shape_cast %39 : vector<8x16x36xf32> to vector<128x36xf32>
    %41 = arith.truncf %40 : vector<128x36xf32> to vector<128x36xbf16>
    %c0_31 = arith.constant 0 : index
    %c0_32 = arith.constant 0 : index
    %42 = vector.load %arg3[%c0_31, %c0_32] : memref<36x128xbf16, #tpu.memory_space<vmem>>, vector<36x128xbf16>
    %cst = arith.constant dense<0.000000e+00> : vector<128x128xf32>
    %43 = tpu.matmul %41, %42, %cst {dimension_numbers = #tpu.dot_dimension_numbers<[1], [0], [0], [1], [0, 0, 1, 1], [], []>} : vector<128x36xbf16>, vector<36x128xbf16>, vector<128x128xf32> -> vector<128x128xf32>
    %c0_33 = arith.constant 0 : index
    %c0_34 = arith.constant 0 : index
    %44 = vector.load %arg4[%c0_33, %c0_34] : memref<1x128xf32, #tpu.memory_space<vmem>>, vector<1x128xf32>
    %45 = vector.shape_cast %44 : vector<1x128xf32> to vector<128xf32>
    %46 = vector.shape_cast %45 : vector<128xf32> to vector<1x128xf32>
    %47 = vector.broadcast %46 : vector<1x128xf32> to vector<128x128xf32>
    %48 = arith.addf %43, %47 : vector<128x128xf32>
    %cst_35 = arith.constant 0.000000e+00 : f32
    %49 = vector.broadcast %cst_35 : f32 to vector<128x128xf32>
    %50 = arith.cmpf ogt, %48, %49 : vector<128x128xf32>
    %cst_36 = arith.constant 1.000000e-01 : f32
    %51 = vector.broadcast %cst_36 : f32 to vector<128x128xf32>
    %52 = arith.mulf %51, %48 : vector<128x128xf32>
    %53 = arith.select %50, %48, %52 : vector<128x128xi1>, vector<128x128xf32>
    %54 = vector.shape_cast %53 : vector<128x128xf32> to vector<1x8x16x128xf32>
    %c0_37 = arith.constant 0 : index
    %c0_38 = arith.constant 0 : index
    %c0_39 = arith.constant 0 : index
    %c0_40 = arith.constant 0 : index
    %55 = vector.load %arg5[%c0_37, %c0_38, %c0_39, %c0_40] : memref<1x8x16x128xf32, #tpu.memory_space<vmem>>, vector<1x8x16x128xf32>
    tpu.vector_store %arg5[%c0_37, %c0_38, %c0_39, %c0_40], %54 {strides = array<i32>} : memref<1x8x16x128xf32, #tpu.memory_space<vmem>>, vector<1x8x16x128xf32>,
    return
  }
  func.func @transform_0(%arg0: i32, %arg1: i32) -> (i32, i32, i32, i32) {
    %c0_i32 = arith.constant 0 : i32
    %c0_i32_0 = arith.constant 0 : i32
    %c0_i32_1 = arith.constant 0 : i32
    %c0_i32_2 = arith.constant 0 : i32
    return %arg0, %c0_i32, %c0_i32_0, %c0_i32_1 : i32, i32, i32, i32
  }
  func.func @transform_1(%arg0: i32, %arg1: i32) -> (i32, i32) {
    %c0_i32 = arith.constant 0 : i32
    %c0_i32_0 = arith.constant 0 : i32
    %c0_i32_1 = arith.constant 0 : i32
    return %c0_i32, %c0_i32_0 : i32, i32
  }
  func.func @transform_2(%arg0: i32, %arg1: i32) -> (i32, i32) {
    %c0_i32 = arith.constant 0 : i32
    %c0_i32_0 = arith.constant 0 : i32
    %c0_i32_1 = arith.constant 0 : i32
    return %c0_i32, %c0_i32_0 : i32, i32
  }
  func.func @transform_3(%arg0: i32, %arg1: i32) -> (i32, i32, i32, i32) {
    %c0_i32 = arith.constant 0 : i32
    %c0_i32_0 = arith.constant 0 : i32
    %c0_i32_1 = arith.constant 0 : i32
    return %arg0, %arg1, %c0_i32, %c0_i32_0 : i32, i32, i32, i32
  }
}

</mosaic_0001>

<llo_original>
// kernel: tpu_custom_call.1
$region0: #{tpu_custom_call.1}
  #allocation0 [shape = 'u32[]', space=smem, size = 0x4, offset = 0x4, fixed_abs, tag = 'smem constant byte address 0x4 - core index']
  #allocation1 [shape = 'u32[144,128]{1,0:T(1,128)}', space=vmem, size = 0x12000, scoped, tag = 'internal scratch']
  %s0 = inlined_call_operand.vmem [shape: f32[2,18,18,4], index: 0, kind: input, shape index: {}]
  %s1 = inlined_call_operand.vmem [shape: bf16[36,128], index: 1, kind: input, shape index: {}]
  %s2 = inlined_call_operand.vmem [shape: f32[1,128], index: 2, kind: input, shape index: {}]
  %s3 = inlined_call_operand.hbm [shape: f32[2,16,16,128], index: 3, kind: output, shape index: {}]
  %s4 = sld [smem:[#allocation0]]
  $region45: #{tpu_custom_call.1} parent=0
    _
  %s6 = ssub.s32 1, %s4
  %s7 = scalar_select 0, %s6, %s4
  $region1: #{tpu_custom_call.1} parent=0
    #allocation2 [shape = 'u8[131072]{0}', space=vmem, size = 0x20000, scoped, tag = 'output window, operand 0']
    #allocation3 [shape = 's32[2]{0}', space=sflag, size = 0x8, scoped, tag = 'scoped memory for tpu_custom_call.1']
    %8 = vsyncpa [#allocation3], 0
    %s9 = scalar_lea.sflag [#allocation3], 1
    %10 = vsyncpa %s9, 0
    loop: start=0, step=1, limit=6
    $region2: #{tpu_custom_call.1} parent=1 // loop_pre_header
      _
    $region3: #{tpu_custom_call.1} parent=1 // loop_header
      %s12 = sphi 0, %s16
      %p13 = scmp.ge.s32.totalorder %s12, 6
      %s19 = sphi 0, %s31
      %s20 = sphi 0, %s27
      %s21 = sphi 0, %s19
      %s22 = sphi 0, %s20
      %s23 = sphi 0, %s21
      %s24 = sphi 0, %s22
      %s34 = sphi 0, %s36
      %s37 = sphi 0, %s34
      %s38 = sphi 0, %s37
      %s54 = sphi 0, %s38
      %s58 = sphi 0, %s58
      %s60 = sphi 0, %s58
      %s61 = sphi 0, %s60
      %s75 = sphi 0, %s61
      %s79 = sphi 0, %s79
      %s81 = sphi 0, %s79
      %s82 = sphi 0, %s81
      %s96 = sphi 0, %s82
      %s104 = sphi 0, %s106
      %s107 = sphi 0, %s104
      %s108 = sphi 0, %s107
      %s124 = sphi 0, %s108
    $region4: #{tpu_custom_call.1} parent=1 // loop_header_branch
      %15 = sbr.rel (%p13) target = $region8
    $region5: #{tpu_custom_call.1} parent=1 // loop_body
      %s17 = ssub.s32 %s12, 1
      %s18 = ssub.s32 %s12, 2
      %s25 = sadd.s32 1, %s20
      %p26 = scmp.ge.s32.totalorder %s25, 2
      %s27 = scalar_select %p26, 0, %s25
      %s28 = sadd.s32 1, %s19
      %s29 = scalar_select %p26, %s28, %s19
      %p30 = scmp.ge.s32.totalorder %s29, 2
      %s31 = scalar_select %p30, 0, %s29
      %s32 = ssub.s32 %s19, %s31
      %p33 = scmp.eq.s32.totalorder %s32, 0
      %s35 = sadd.s32 %s34, 1
      %s36 = scalar_select %p33, %s34, %s35
      %p39 = pneg %p33
      %p40 = scmp.eq.s32.totalorder %s12, 3
      %p41 = por %p39, %p40
      %p42 = scmp.ne.s32.totalorder %s34, %s37
      %p43 = scmp.eq.s32.totalorder %s12, 0
      %p44 = por %p42, %p43
      %p45 = scmp.ne.s32.totalorder %s34, %s37
      %p46 = scmp.eq.s32.totalorder %s17, 3
      %p47 = por %p45, %p46
      %p48 = scmp.ne.s32.totalorder %s37, %s38
      %p49 = scmp.eq.s32.totalorder %s17, 0
      %p50 = por %p48, %p49
      %p51 = scmp.ne.s32.totalorder %s37, %s38
      %p52 = scmp.eq.s32.totalorder %s18, 3
      %p53 = por %p51, %p52
      %p55 = scmp.ne.s32.totalorder %s38, %s54
      %p56 = scmp.eq.s32.totalorder %s18, 0
      %p57 = por %p55, %p56
      %s59 = sadd.s32 %s58, 1
      %p62 = scmp.eq.s32.totalorder %s12, 3
      %p63 = scmp.ne.s32.totalorder %s58, %s60
      %p64 = scmp.eq.s32.totalorder %s12, 0
      %p65 = por %p63, %p64
      %p66 = scmp.ne.s32.totalorder %s58, %s60
      %p67 = scmp.eq.s32.totalorder %s17, 3
      %p68 = por %p66, %p67
      %p69 = scmp.ne.s32.totalorder %s60, %s61
      %p70 = scmp.eq.s32.totalorder %s17, 0
      %p71 = por %p69, %p70
      %p72 = scmp.ne.s32.totalorder %s60, %s61
      %p73 = scmp.eq.s32.totalorder %s18, 3
      %p74 = por %p72, %p73
      %p76 = scmp.ne.s32.totalorder %s61, %s75
      %p77 = scmp.eq.s32.totalorder %s18, 0
      %p78 = por %p76, %p77
      %s80 = sadd.s32 %s79, 1
      %p83 = scmp.eq.s32.totalorder %s12, 3
      %p84 = scmp.ne.s32.totalorder %s79, %s81
      %p85 = scmp.eq.s32.totalorder %s12, 0
      %p86 = por %p84, %p85
      %p87 = scmp.ne.s32.totalorder %s79, %s81
      %p88 = scmp.eq.s32.totalorder %s17, 3
      %p89 = por %p87, %p88
      %p90 = scmp.ne.s32.totalorder %s81, %s82
      %p91 = scmp.eq.s32.totalorder %s17, 0
      %p92 = por %p90, %p91
      %p93 = scmp.ne.s32.totalorder %s81, %s82
      %p94 = scmp.eq.s32.totalorder %s18, 3
      %p95 = por %p93, %p94
      %p97 = scmp.ne.s32.totalorder %s82, %s96
      %p98 = scmp.eq.s32.totalorder %s18, 0
      %p99 = por %p97, %p98
      %s100 = ssub.s32 %s19, %s31
      %s101 = ssub.s32 %s20, %s27
      %s102 = sor.u32 %s100, %s101
      %p103 = scmp.eq.s32.totalorder %s102, 0
      %s105 = sadd.s32 %s104, 1
      %s106 = scalar_select %p103, %s104, %s105
      %p109 = pneg %p103
      %p110 = scmp.eq.s32.totalorder %s12, 3
      %p111 = por %p109, %p110
      %p112 = scmp.ne.s32.totalorder %s104, %s107
      %p113 = scmp.eq.s32.totalorder %s12, 0
      %p114 = por %p112, %p113
      %p115 = scmp.ne.s32.totalorder %s104, %s107
      %p116 = scmp.eq.s32.totalorder %s17, 3
      %p117 = por %p115, %p116
      %p118 = scmp.ne.s32.totalorder %s107, %s108
      %p119 = scmp.eq.s32.totalorder %s17, 0
      %p120 = por %p118, %p119
      %p121 = scmp.ne.s32.totalorder %s107, %s108
      %p122 = scmp.eq.s32.totalorder %s18, 3
      %p123 = por %p121, %p122
      %p125 = scmp.ne.s32.totalorder %s108, %s124
      %p126 = scmp.eq.s32.totalorder %s18, 0
      %p127 = por %p125, %p126
      %p128 = scmp.le.s32.totalorder 1, %s12
      %p129 = scmp.lt.s32.totalorder %s12, 5
      %p130 = pnand %p128, %p129
      %p131 = pneg %p130
      // Predicated region
      $region9: #{tpu_custom_call.1} parent=5 // pred_check
        _
      $region10: #{tpu_custom_call.1} parent=5 // pred_check_branch
        %133 = sbr.rel (%p130) target = $region12
      $region11: #{tpu_custom_call.1} parent=5 // pred_region
        %s134 = ssub.s32 %s12, 1
        // Predicated region
        $region13: #{tpu_custom_call.1} parent=11 // pred_check
          %p135 = pneg %p71
        $region14: #{tpu_custom_call.1} parent=11 // pred_check_branch
          %137 = sbr.rel (%p135) target = $region16
        $region15: #{tpu_custom_call.1} parent=11 // pred_region
          _
        $region16: #{tpu_custom_call.1} parent=11 // pred_fallthru
          _
        // Predicated region
        $region17: #{tpu_custom_call.1} parent=11 // pred_check
          %p138 = pneg %p92
        $region18: #{tpu_custom_call.1} parent=11 // pred_check_branch
          %140 = sbr.rel (%p138) target = $region20
        $region19: #{tpu_custom_call.1} parent=11 // pred_region
          _
        $region20: #{tpu_custom_call.1} parent=11 // pred_fallthru
          _
      $region12: #{tpu_custom_call.1} parent=5 // pred_fallthru
        _
      %p141 = scmp.lt.s32.totalorder %s12, 4
      // Predicated region
      $region21: #{tpu_custom_call.1} parent=5 // pred_check
        %p142 = pneg %p141
      $region22: #{tpu_custom_call.1} parent=5 // pred_check_branch
        %144 = sbr.rel (%p142) target = $region24
      $region23: #{tpu_custom_call.1} parent=5 // pred_region
        // Predicated region
        $region25: #{tpu_custom_call.1} parent=23 // pred_check
          %p145 = pneg %p44
        $region26: #{tpu_custom_call.1} parent=23 // pred_check_branch
          %147 = sbr.rel (%p145) target = $region28
        $region27: #{tpu_custom_call.1} parent=23 // pred_region
          %p148 = scmp.lt.s32.totalorder %s19, 1
          %s149 = scalar_select %p148, %s19, 1
          %s150 = smul.addr %s149, 54
          %s151 = smul.addr %s150, 8
          %s152 = scalar_lea.vmem %s0, %s151
        $region28: #{tpu_custom_call.1} parent=23 // pred_fallthru
          _
      $region24: #{tpu_custom_call.1} parent=5 // pred_fallthru
        _
      %p153 = scmp.le.s32.totalorder 1, %s12
      %p154 = scmp.lt.s32.totalorder %s12, 5
      %p155 = pnand %p153, %p154
      %p156 = pneg %p155
      // Predicated region
      $region29: #{tpu_custom_call.1} parent=5 // pred_check
        _
      $region30: #{tpu_custom_call.1} parent=5 // pred_check_branch
        %158 = sbr.rel (%p155) target = $region32
      $region31: #{tpu_custom_call.1} parent=5 // pred_region
        %s159 = ssub.s32 %s12, 1
        %p160 = scmp.lt.s32.totalorder %s21, 1
        %s161 = scalar_select %p160, %s21, 1
        %s162 = smul.addr %s161, 54
        %s163 = smul.addr %s162, 8
        %s164 = scalar_lea.vmem %s0, %s163
        %p165 = pneg %p50
        %p166 = pneg %p47
        %p167 = pneg %p71
        %p168 = pneg %p68
        %p169 = pneg %p92
        %p170 = pneg %p89
        %p171 = pneg %p120
        %p172 = pneg %p117
        %s173 = sand.u32 %s107, 1
        %s174 = scalar_lea.sflag [#allocation3], %s173
        %s175 = sand.u32 %s107, 1
        %s176 = smul.addr %s175, 128
        %s177 = scalar_lea.vmem [#allocation2], %s176
        %p178 = scmp.lt.s32.totalorder %s21, 1
        %s179 = scalar_select %p178, %s21, 1
        %s180 = smul.addr %s179, 54
        %s181 = smul.addr %s180, 8
        %s182 = scalar_lea.vmem %s0, %s181
        %s183 = smul.u32 8, %s22
        %s185 = smul.u32 %s22, 8
        %s186 = smul.u32 %s185, 24
        %s187 = scalar_lea.vmem %s182, %s186
        %v188 = vld [vmem:[%s187] sm:$0xff]
        %v189 = vld [vmem:[%s187 + $0x8] sm:$0xff]
        %v190 = vld [vmem:[%s187 + $0x18] sm:$0xff]
        %v191 = vld [vmem:[%s187 + $0x20] sm:$0xff]
        %v192 = vld [vmem:[%s187 + $0x30] sm:$0xff]
        %v193 = vld [vmem:[%s187 + $0x38] sm:$0xff]
        %v194 = vld [vmem:[%s187 + $0x48] sm:$0xff]
        %v195 = vld [vmem:[%s187 + $0x50] sm:$0xff]
        %v196 = vld [vmem:[%s187 + $0x60] sm:$0xff]
        %v197 = vld [vmem:[%s187 + $0x68] sm:$0xff]
        %v198 = vld [vmem:[%s187 + $0x78] sm:$0xff]
        %v199 = vld [vmem:[%s187 + $0x80] sm:$0xff]
        %v200 = vld [vmem:[%s187 + $0x90] sm:$0xff]
        %v201 = vld [vmem:[%s187 + $0x98] sm:$0xff]
        %v202 = vld [vmem:[%s187 + $0xa8] sm:$0xff]
        %v203 = vld [vmem:[%s187 + $0xb0] sm:$0xff]
        %v204 = vld [vmem:[%s187 + $0x1] sm:$0xff]
        %v205 = vld [vmem:[%s187 + $0x9] sm:$0xff]
        %v206 = vld [vmem:[%s187 + $0x19] sm:$0xff]
        %v207 = vld [vmem:[%s187 + $0x21] sm:$0xff]
        %v208 = vld [vmem:[%s187 + $0x31] sm:$0xff]
        %v209 = vld [vmem:[%s187 + $0x39] sm:$0xff]
        %v210 = vld [vmem:[%s187 + $0x49] sm:$0xff]
        %v211 = vld [vmem:[%s187 + $0x51] sm:$0xff]
        %v212 = vld [vmem:[%s187 + $0x61] sm:$0xff]
        %v213 = vld [vmem:[%s187 + $0x69] sm:$0xff]
        %v214 = vld [vmem:[%s187 + $0x79] sm:$0xff]
        %v215 = vld [vmem:[%s187 + $0x81] sm:$0xff]
        %v216 = vld [vmem:[%s187 + $0x91] sm:$0xff]
        %v217 = vld [vmem:[%s187 + $0x99] sm:$0xff]
        %v218 = vld [vmem:[%s187 + $0xa9] sm:$0xff]
        %v219 = vld [vmem:[%s187 + $0xb1] sm:$0xff]
        %v220 = vld [vmem:[%s187 + $0x2] sm:$0xff]
        %v221 = vld [vmem:[%s187 + $0xa] sm:$0xff]
        %v222 = vld [vmem:[%s187 + $0x1a] sm:$0xff]
        %v223 = vld [vmem:[%s187 + $0x22] sm:$0xff]
        %v224 = vld [vmem:[%s187 + $0x32] sm:$0xff]
        %v225 = vld [vmem:[%s187 + $0x3a] sm:$0xff]
        %v226 = vld [vmem:[%s187 + $0x4a] sm:$0xff]
        %v227 = vld [vmem:[%s187 + $0x52] sm:$0xff]
        %v228 = vld [vmem:[%s187 + $0x62] sm:$0xff]
        %v229 = vld [vmem:[%s187 + $0x6a] sm:$0xff]
        %v230 = vld [vmem:[%s187 + $0x7a] sm:$0xff]
        %v231 = vld [vmem:[%s187 + $0x82] sm:$0xff]
        %v232 = vld [vmem:[%s187 + $0x92] sm:$0xff]
        %v233 = vld [vmem:[%s187 + $0x9a] sm:$0xff]
        %v234 = vld [vmem:[%s187 + $0xaa] sm:$0xff]
        %v235 = vld [vmem:[%s187 + $0xb2] sm:$0xff]
        %s236 = sadd.s32 %s185, 1
        %s237 = smul.u32 %s236, 24
        %s238 = scalar_lea.vmem %s182, %s237
        %v239 = vld [vmem:[%s238] sm:$0xff]
        %v240 = vld [vmem:[%s238 + $0x8] sm:$0xff]
        %v241 = vld [vmem:[%s238 + $0x18] sm:$0xff]
        %v242 = vld [vmem:[%s238 + $0x20] sm:$0xff]
        %v243 = vld [vmem:[%s238 + $0x30] sm:$0xff]
        %v244 = vld [vmem:[%s238 + $0x38] sm:$0xff]
        %v245 = vld [vmem:[%s238 + $0x48] sm:$0xff]
        %v246 = vld [vmem:[%s238 + $0x50] sm:$0xff]
        %v247 = vld [vmem:[%s238 + $0x60] sm:$0xff]
        %v248 = vld [vmem:[%s238 + $0x68] sm:$0xff]
        %v249 = vld [vmem:[%s238 + $0x78] sm:$0xff]
        %v250 = vld [vmem:[%s238 + $0x80] sm:$0xff]
        %v251 = vld [vmem:[%s238 + $0x90] sm:$0xff]
        %v252 = vld [vmem:[%s238 + $0x98] sm:$0xff]
        %v253 = vld [vmem:[%s238 + $0xa8] sm:$0xff]
        %v254 = vld [vmem:[%s238 + $0xb0] sm:$0xff]
        %v255 = vld [vmem:[%s238 + $0x1] sm:$0xff]
        %v256 = vld [vmem:[%s238 + $0x9] sm:$0xff]
        %v257 = vld [vmem:[%s238 + $0x19] sm:$0xff]
        %v258 = vld [vmem:[%s238 + $0x21] sm:$0xff]
        %v259 = vld [vmem:[%s238 + $0x31] sm:$0xff]
        %v260 = vld [vmem:[%s238 + $0x39] sm:$0xff]
        %v261 = vld [vmem:[%s238 + $0x49] sm:$0xff]
        %v262 = vld [vmem:[%s238 + $0x51] sm:$0xff]
        %v263 = vld [vmem:[%s238 + $0x61] sm:$0xff]
        %v264 = vld [vmem:[%s238 + $0x69] sm:$0xff]
        %v265 = vld [vmem:[%s238 + $0x79] sm:$0xff]
        %v266 = vld [vmem:[%s238 + $0x81] sm:$0xff]
        %v267 = vld [vmem:[%s238 + $0x91] sm:$0xff]
        %v268 = vld [vmem:[%s238 + $0x99] sm:$0xff]
        %v269 = vld [vmem:[%s238 + $0xa9] sm:$0xff]
        %v270 = vld [vmem:[%s238 + $0xb1] sm:$0xff]
        %v271 = vld [vmem:[%s238 + $0x2] sm:$0xff]
        %v272 = vld [vmem:[%s238 + $0xa] sm:$0xff]
        %v273 = vld [vmem:[%s238 + $0x1a] sm:$0xff]
        %v274 = vld [vmem:[%s238 + $0x22] sm:$0xff]
        %v275 = vld [vmem:[%s238 + $0x32] sm:$0xff]
        %v276 = vld [vmem:[%s238 + $0x3a] sm:$0xff]
        %v277 = vld [vmem:[%s238 + $0x4a] sm:$0xff]
        %v278 = vld [vmem:[%s238 + $0x52] sm:$0xff]
        %v279 = vld [vmem:[%s238 + $0x62] sm:$0xff]
        %v280 = vld [vmem:[%s238 + $0x6a] sm:$0xff]
        %v281 = vld [vmem:[%s238 + $0x7a] sm:$0xff]
        %v282 = vld [vmem:[%s238 + $0x82] sm:$0xff]
        %v283 = vld [vmem:[%s238 + $0x92] sm:$0xff]
        %v284 = vld [vmem:[%s238 + $0x9a] sm:$0xff]
        %v285 = vld [vmem:[%s238 + $0xaa] sm:$0xff]
        %v286 = vld [vmem:[%s238 + $0xb2] sm:$0xff]
        %s287 = sadd.s32 %s185, 2
        %s288 = smul.u32 %s287, 24
        %s289 = scalar_lea.vmem %s182, %s288
        %v290 = vld [vmem:[%s289] sm:$0xff]
        %v291 = vld [vmem:[%s289 + $0x8] sm:$0xff]
        %v292 = vld [vmem:[%s289 + $0x18] sm:$0xff]
        %v293 = vld [vmem:[%s289 + $0x20] sm:$0xff]
        %v294 = vld [vmem:[%s289 + $0x30] sm:$0xff]
        %v295 = vld [vmem:[%s289 + $0x38] sm:$0xff]
        %v296 = vld [vmem:[%s289 + $0x48] sm:$0xff]
        %v297 = vld [vmem:[%s289 + $0x50] sm:$0xff]
        %v298 = vld [vmem:[%s289 + $0x60] sm:$0xff]
        %v299 = vld [vmem:[%s289 + $0x68] sm:$0xff]
        %v300 = vld [vmem:[%s289 + $0x78] sm:$0xff]
        %v301 = vld [vmem:[%s289 + $0x80] sm:$0xff]
        %v302 = vld [vmem:[%s289 + $0x90] sm:$0xff]
        %v303 = vld [vmem:[%s289 + $0x98] sm:$0xff]
        %v304 = vld [vmem:[%s289 + $0xa8] sm:$0xff]
        %v305 = vld [vmem:[%s289 + $0xb0] sm:$0xff]
        %v306 = vld [vmem:[%s289 + $0x1] sm:$0xff]
        %v307 = vld [vmem:[%s289 + $0x9] sm:$0xff]
        %v308 = vld [vmem:[%s289 + $0x19] sm:$0xff]
        %v309 = vld [vmem:[%s289 + $0x21] sm:$0xff]
        %v310 = vld [vmem:[%s289 + $0x31] sm:$0xff]
        %v311 = vld [vmem:[%s289 + $0x39] sm:$0xff]
        %v312 = vld [vmem:[%s289 + $0x49] sm:$0xff]
        %v313 = vld [vmem:[%s289 + $0x51] sm:$0xff]
        %v314 = vld [vmem:[%s289 + $0x61] sm:$0xff]
        %v315 = vld [vmem:[%s289 + $0x69] sm:$0xff]
        %v316 = vld [vmem:[%s289 + $0x79] sm:$0xff]
        %v317 = vld [vmem:[%s289 + $0x81] sm:$0xff]
        %v318 = vld [vmem:[%s289 + $0x91] sm:$0xff]
        %v319 = vld [vmem:[%s289 + $0x99] sm:$0xff]
        %v320 = vld [vmem:[%s289 + $0xa9] sm:$0xff]
        %v321 = vld [vmem:[%s289 + $0xb1] sm:$0xff]
        %v322 = vld [vmem:[%s289 + $0x2] sm:$0xff]
        %v323 = vld [vmem:[%s289 + $0xa] sm:$0xff]
        %v324 = vld [vmem:[%s289 + $0x1a] sm:$0xff]
        %v325 = vld [vmem:[%s289 + $0x22] sm:$0xff]
        %v326 = vld [vmem:[%s289 + $0x32] sm:$0xff]
        %v327 = vld [vmem:[%s289 + $0x3a] sm:$0xff]
        %v328 = vld [vmem:[%s289 + $0x4a] sm:$0xff]
        %v329 = vld [vmem:[%s289 + $0x52] sm:$0xff]
        %v330 = vld [vmem:[%s289 + $0x62] sm:$0xff]
        %v331 = vld [vmem:[%s289 + $0x6a] sm:$0xff]
        %v332 = vld [vmem:[%s289 + $0x7a] sm:$0xff]
        %v333 = vld [vmem:[%s289 + $0x82] sm:$0xff]
        %v334 = vld [vmem:[%s289 + $0x92] sm:$0xff]
        %v335 = vld [vmem:[%s289 + $0x9a] sm:$0xff]
        %v336 = vld [vmem:[%s289 + $0xaa] sm:$0xff]
        %v337 = vld [vmem:[%s289 + $0xb2] sm:$0xff]
        %354 = vrot.lane.b32.xlu0 %v204, 4
        %v355 = vpop.permute.xlu0 %354
        %356 = vrot.lane.b32.xlu0 %v205, 4
        %v357 = vpop.permute.xlu0 %356
        %358 = vrot.lane.b32.xlu0 %v206, 4
        %v359 = vpop.permute.xlu0 %358
        %360 = vrot.lane.b32.xlu0 %v207, 4
        %v361 = vpop.permute.xlu0 %360
        %362 = vrot.lane.b32.xlu0 %v208, 4
        %v363 = vpop.permute.xlu0 %362
        %364 = vrot.lane.b32.xlu0 %v209, 4
        %v365 = vpop.permute.xlu0 %364
        %366 = vrot.lane.b32.xlu0 %v210, 4
        %v367 = vpop.permute.xlu0 %366
        %368 = vrot.lane.b32.xlu0 %v211, 4
        %v369 = vpop.permute.xlu0 %368
        %370 = vrot.lane.b32.xlu0 %v212, 4
        %v371 = vpop.permute.xlu0 %370
        %372 = vrot.lane.b32.xlu0 %v213, 4
        %v373 = vpop.permute.xlu0 %372
        %374 = vrot.lane.b32.xlu0 %v214, 4
        %v375 = vpop.permute.xlu0 %374
        %376 = vrot.lane.b32.xlu0 %v215, 4
        %v377 = vpop.permute.xlu0 %376
        %378 = vrot.lane.b32.xlu0 %v216, 4
        %v379 = vpop.permute.xlu0 %378
        %380 = vrot.lane.b32.xlu0 %v217, 4
        %v381 = vpop.permute.xlu0 %380
        %382 = vrot.lane.b32.xlu0 %v218, 4
        %v383 = vpop.permute.xlu0 %382
        %384 = vrot.lane.b32.xlu0 %v219, 4
        %v385 = vpop.permute.xlu0 %384
        %418 = vrot.lane.b32.xlu0 %v220, 8
        %v419 = vpop.permute.xlu0 %418
        %420 = vrot.lane.b32.xlu0 %v221, 8
        %v421 = vpop.permute.xlu0 %420
        %422 = vrot.lane.b32.xlu0 %v222, 8
        %v423 = vpop.permute.xlu0 %422
        %424 = vrot.lane.b32.xlu0 %v223, 8
        %v425 = vpop.permute.xlu0 %424
        %426 = vrot.lane.b32.xlu0 %v224, 8
        %v427 = vpop.permute.xlu0 %426
        %428 = vrot.lane.b32.xlu0 %v225, 8
        %v429 = vpop.permute.xlu0 %428
        %430 = vrot.lane.b32.xlu0 %v226, 8
        %v431 = vpop.permute.xlu0 %430
        %432 = vrot.lane.b32.xlu0 %v227, 8
        %v433 = vpop.permute.xlu0 %432
        %434 = vrot.lane.b32.xlu0 %v228, 8
        %v435 = vpop.permute.xlu0 %434
        %436 = vrot.lane.b32.xlu0 %v229, 8
        %v437 = vpop.permute.xlu0 %436
        %438 = vrot.lane.b32.xlu0 %v230, 8
        %v439 = vpop.permute.xlu0 %438
        %440 = vrot.lane.b32.xlu0 %v231, 8
        %v441 = vpop.permute.xlu0 %440
        %442 = vrot.lane.b32.xlu0 %v232, 8
        %v443 = vpop.permute.xlu0 %442
        %444 = vrot.lane.b32.xlu0 %v233, 8
        %v445 = vpop.permute.xlu0 %444
        %446 = vrot.lane.b32.xlu0 %v234, 8
        %v447 = vpop.permute.xlu0 %446
        %448 = vrot.lane.b32.xlu0 %v235, 8
        %v449 = vpop.permute.xlu0 %448
        %482 = vrot.lane.b32.xlu0 %v239, 12
        %v483 = vpop.permute.xlu0 %482
        %484 = vrot.lane.b32.xlu0 %v240, 12
        %v485 = vpop.permute.xlu0 %484
        %486 = vrot.lane.b32.xlu0 %v241, 12
        %v487 = vpop.permute.xlu0 %486
        %488 = vrot.lane.b32.xlu0 %v242, 12
        %v489 = vpop.permute.xlu0 %488
        %490 = vrot.lane.b32.xlu0 %v243, 12
        %v491 = vpop.permute.xlu0 %490
        %492 = vrot.lane.b32.xlu0 %v244, 12
        %v493 = vpop.permute.xlu0 %492
        %494 = vrot.lane.b32.xlu0 %v245, 12
        %v495 = vpop.permute.xlu0 %494
        %496 = vrot.lane.b32.xlu0 %v246, 12
        %v497 = vpop.permute.xlu0 %496
        %498 = vrot.lane.b32.xlu0 %v247, 12
        %v499 = vpop.permute.xlu0 %498
        %500 = vrot.lane.b32.xlu0 %v248, 12
        %v501 = vpop.permute.xlu0 %500
        %502 = vrot.lane.b32.xlu0 %v249, 12
        %v503 = vpop.permute.xlu0 %502
        %504 = vrot.lane.b32.xlu0 %v250, 12
        %v505 = vpop.permute.xlu0 %504
        %506 = vrot.lane.b32.xlu0 %v251, 12
        %v507 = vpop.permute.xlu0 %506
        %508 = vrot.lane.b32.xlu0 %v252, 12
        %v509 = vpop.permute.xlu0 %508
        %510 = vrot.lane.b32.xlu0 %v253, 12
        %v511 = vpop.permute.xlu0 %510
        %512 = vrot.lane.b32.xlu0 %v254, 12
        %v513 = vpop.permute.xlu0 %512
        %546 = vrot.lane.b32.xlu0 %v255, 16
        %v547 = vpop.permute.xlu0 %546
        %548 = vrot.lane.b32.xlu0 %v256, 16
        %v549 = vpop.permute.xlu0 %548
        %550 = vrot.lane.b32.xlu0 %v257, 16
        %v551 = vpop.permute.xlu0 %550
        %552 = vrot.lane.b32.xlu0 %v258, 16
        %v553 = vpop.permute.xlu0 %552
        %554 = vrot.lane.b32.xlu0 %v259, 16
        %v555 = vpop.permute.xlu0 %554
        %556 = vrot.lane.b32.xlu0 %v260, 16
        %v557 = vpop.permute.xlu0 %556
        %558 = vrot.lane.b32.xlu0 %v261, 16
        %v559 = vpop.permute.xlu0 %558
        %560 = vrot.lane.b32.xlu0 %v262, 16
        %v561 = vpop.permute.xlu0 %560
        %562 = vrot.lane.b32.xlu0 %v263, 16
        %v563 = vpop.permute.xlu0 %562
        %564 = vrot.lane.b32.xlu0 %v264, 16
        %v565 = vpop.permute.xlu0 %564
        %566 = vrot.lane.b32.xlu0 %v265, 16
        %v567 = vpop.permute.xlu0 %566
        %568 = vrot.lane.b32.xlu0 %v266, 16
        %v569 = vpop.permute.xlu0 %568
        %570 = vrot.lane.b32.xlu0 %v267, 16
        %v571 = vpop.permute.xlu0 %570
        %572 = vrot.lane.b32.xlu0 %v268, 16
        %v573 = vpop.permute.xlu0 %572
        %574 = vrot.lane.b32.xlu0 %v269, 16
        %v575 = vpop.permute.xlu0 %574
        %576 = vrot.lane.b32.xlu0 %v270, 16
        %v577 = vpop.permute.xlu0 %576
        %610 = vrot.lane.b32.xlu0 %v271, 20
        %v611 = vpop.permute.xlu0 %610
        %612 = vrot.lane.b32.xlu0 %v272, 20
        %v613 = vpop.permute.xlu0 %612
        %614 = vrot.lane.b32.xlu0 %v273, 20
        %v615 = vpop.permute.xlu0 %614
        %616 = vrot.lane.b32.xlu0 %v274, 20
        %v617 = vpop.permute.xlu0 %616
        %618 = vrot.lane.b32.xlu0 %v275, 20
        %v619 = vpop.permute.xlu0 %618
        %620 = vrot.lane.b32.xlu0 %v276, 20
        %v621 = vpop.permute.xlu0 %620
        %622 = vrot.lane.b32.xlu0 %v277, 20
        %v623 = vpop.permute.xlu0 %622
        %624 = vrot.lane.b32.xlu0 %v278, 20
        %v625 = vpop.permute.xlu0 %624
        %626 = vrot.lane.b32.xlu0 %v279, 20
        %v627 = vpop.permute.xlu0 %626
        %628 = vrot.lane.b32.xlu0 %v280, 20
        %v629 = vpop.permute.xlu0 %628
        %630 = vrot.lane.b32.xlu0 %v281, 20
        %v631 = vpop.permute.xlu0 %630
        %632 = vrot.lane.b32.xlu0 %v282, 20
        %v633 = vpop.permute.xlu0 %632
        %634 = vrot.lane.b32.xlu0 %v283, 20
        %v635 = vpop.permute.xlu0 %634
        %636 = vrot.lane.b32.xlu0 %v284, 20
        %v637 = vpop.permute.xlu0 %636
        %638 = vrot.lane.b32.xlu0 %v285, 20
        %v639 = vpop.permute.xlu0 %638
        %640 = vrot.lane.b32.xlu0 %v286, 20
        %v641 = vpop.permute.xlu0 %640
        %674 = vrot.lane.b32.xlu0 %v290, 24
        %v675 = vpop.permute.xlu0 %674
        %676 = vrot.lane.b32.xlu0 %v291, 24
        %v677 = vpop.permute.xlu0 %676
        %678 = vrot.lane.b32.xlu0 %v292, 24
        %v679 = vpop.permute.xlu0 %678
        %680 = vrot.lane.b32.xlu0 %v293, 24
        %v681 = vpop.permute.xlu0 %680
        %682 = vrot.lane.b32.xlu0 %v294, 24
        %v683 = vpop.permute.xlu0 %682
        %684 = vrot.lane.b32.xlu0 %v295, 24
        %v685 = vpop.permute.xlu0 %684
        %686 = vrot.lane.b32.xlu0 %v296, 24
        %v687 = vpop.permute.xlu0 %686
        %688 = vrot.lane.b32.xlu0 %v297, 24
        %v689 = vpop.permute.xlu0 %688
        %690 = vrot.lane.b32.xlu0 %v298, 24
        %v691 = vpop.permute.xlu0 %690
        %692 = vrot.lane.b32.xlu0 %v299, 24
        %v693 = vpop.permute.xlu0 %692
        %694 = vrot.lane.b32.xlu0 %v300, 24
        %v695 = vpop.permute.xlu0 %694
        %696 = vrot.lane.b32.xlu0 %v301, 24
        %v697 = vpop.permute.xlu0 %696
        %698 = vrot.lane.b32.xlu0 %v302, 24
        %v699 = vpop.permute.xlu0 %698
        %700 = vrot.lane.b32.xlu0 %v303, 24
        %v701 = vpop.permute.xlu0 %700
        %702 = vrot.lane.b32.xlu0 %v304, 24
        %v703 = vpop.permute.xlu0 %702
        %704 = vrot.lane.b32.xlu0 %v305, 24
        %v705 = vpop.permute.xlu0 %704
        %738 = vrot.lane.b32.xlu0 %v306, 28
        %v739 = vpop.permute.xlu0 %738
        %740 = vrot.lane.b32.xlu0 %v307, 28
        %v741 = vpop.permute.xlu0 %740
        %742 = vrot.lane.b32.xlu0 %v308, 28
        %v743 = vpop.permute.xlu0 %742
        %744 = vrot.lane.b32.xlu0 %v309, 28
        %v745 = vpop.permute.xlu0 %744
        %746 = vrot.lane.b32.xlu0 %v310, 28
        %v747 = vpop.permute.xlu0 %746
        %748 = vrot.lane.b32.xlu0 %v311, 28
        %v749 = vpop.permute.xlu0 %748
        %750 = vrot.lane.b32.xlu0 %v312, 28
        %v751 = vpop.permute.xlu0 %750
        %752 = vrot.lane.b32.xlu0 %v313, 28
        %v753 = vpop.permute.xlu0 %752
        %754 = vrot.lane.b32.xlu0 %v314, 28
        %v755 = vpop.permute.xlu0 %754
        %756 = vrot.lane.b32.xlu0 %v315, 28
        %v757 = vpop.permute.xlu0 %756
        %758 = vrot.lane.b32.xlu0 %v316, 28
        %v759 = vpop.permute.xlu0 %758
        %760 = vrot.lane.b32.xlu0 %v317, 28
        %v761 = vpop.permute.xlu0 %760
        %762 = vrot.lane.b32.xlu0 %v318, 28
        %v763 = vpop.permute.xlu0 %762
        %764 = vrot.lane.b32.xlu0 %v319, 28
        %v765 = vpop.permute.xlu0 %764
        %766 = vrot.lane.b32.xlu0 %v320, 28
        %v767 = vpop.permute.xlu0 %766
        %768 = vrot.lane.b32.xlu0 %v321, 28
        %v769 = vpop.permute.xlu0 %768
        %802 = vrot.lane.b32.xlu0 %v322, 32
        %v803 = vpop.permute.xlu0 %802
        %804 = vrot.lane.b32.xlu0 %v323, 32
        %v805 = vpop.permute.xlu0 %804
        %806 = vrot.lane.b32.xlu0 %v324, 32
        %v807 = vpop.permute.xlu0 %806
        %808 = vrot.lane.b32.xlu0 %v325, 32
        %v809 = vpop.permute.xlu0 %808
        %810 = vrot.lane.b32.xlu0 %v326, 32
        %v811 = vpop.permute.xlu0 %810
        %812 = vrot.lane.b32.xlu0 %v327, 32
        %v813 = vpop.permute.xlu0 %812
        %814 = vrot.lane.b32.xlu0 %v328, 32
        %v815 = vpop.permute.xlu0 %814
        %816 = vrot.lane.b32.xlu0 %v329, 32
        %v817 = vpop.permute.xlu0 %816
        %818 = vrot.lane.b32.xlu0 %v330, 32
        %v819 = vpop.permute.xlu0 %818
        %820 = vrot.lane.b32.xlu0 %v331, 32
        %v821 = vpop.permute.xlu0 %820
        %822 = vrot.lane.b32.xlu0 %v332, 32
        %v823 = vpop.permute.xlu0 %822
        %824 = vrot.lane.b32.xlu0 %v333, 32
        %v825 = vpop.permute.xlu0 %824
        %826 = vrot.lane.b32.xlu0 %v334, 32
        %v827 = vpop.permute.xlu0 %826
        %828 = vrot.lane.b32.xlu0 %v335, 32
        %v829 = vpop.permute.xlu0 %828
        %830 = vrot.lane.b32.xlu0 %v336, 32
        %v831 = vpop.permute.xlu0 %830
        %832 = vrot.lane.b32.xlu0 %v337, 32
        %v833 = vpop.permute.xlu0 %832
        %vm850 = vcmask 31744
        %v851 = vsel %vm850, %v188, %v355
        %v852 = vsel %vm850, %v189, %v357
        %v853 = vsel %vm850, %v190, %v359
        %v854 = vsel %vm850, %v191, %v361
        %v855 = vsel %vm850, %v192, %v363
        %v856 = vsel %vm850, %v193, %v365
        %v857 = vsel %vm850, %v194, %v367
        %v858 = vsel %vm850, %v195, %v369
        %v859 = vsel %vm850, %v196, %v371
        %v860 = vsel %vm850, %v197, %v373
        %v861 = vsel %vm850, %v198, %v375
        %v862 = vsel %vm850, %v199, %v377
        %v863 = vsel %vm850, %v200, %v379
        %v864 = vsel %vm850, %v201, %v381
        %v865 = vsel %vm850, %v202, %v383
        %v866 = vsel %vm850, %v203, %v385
        %vm867 = vcmask 64512
        %v868 = vsel %vm867, %v851, %v419
        %v869 = vsel %vm867, %v852, %v421
        %v870 = vsel %vm867, %v853, %v423
        %v871 = vsel %vm867, %v854, %v425
        %v872 = vsel %vm867, %v855, %v427
        %v873 = vsel %vm867, %v856, %v429
        %v874 = vsel %vm867, %v857, %v431
        %v875 = vsel %vm867, %v858, %v433
        %v876 = vsel %vm867, %v859, %v435
        %v877 = vsel %vm867, %v860, %v437
        %v878 = vsel %vm867, %v861, %v439
        %v879 = vsel %vm867, %v862, %v441
        %v880 = vsel %vm867, %v863, %v443
        %v881 = vsel %vm867, %v864, %v445
        %v882 = vsel %vm867, %v865, %v447
        %v883 = vsel %vm867, %v866, %v449
        %vm884 = vcmask 97280
        %v885 = vsel %vm884, %v868, %v483
        %v886 = vsel %vm884, %v869, %v485
        %v887 = vsel %vm884, %v870, %v487
        %v888 = vsel %vm884, %v871, %v489
        %v889 = vsel %vm884, %v872, %v491
        %v890 = vsel %vm884, %v873, %v493
        %v891 = vsel %vm884, %v874, %v495
        %v892 = vsel %vm884, %v875, %v497
        %v893 = vsel %vm884, %v876, %v499
        %v894 = vsel %vm884, %v877, %v501
        %v895 = vsel %vm884, %v878, %v503
        %v896 = vsel %vm884, %v879, %v505
        %v897 = vsel %vm884, %v880, %v507
        %v898 = vsel %vm884, %v881, %v509
        %v899 = vsel %vm884, %v882, %v511
        %v900 = vsel %vm884, %v883, %v513
        %vm901 = vcmask 130048
        %v902 = vsel %vm901, %v885, %v547
        %v903 = vsel %vm901, %v886, %v549
        %v904 = vsel %vm901, %v887, %v551
        %v905 = vsel %vm901, %v888, %v553
        %v906 = vsel %vm901, %v889, %v555
        %v907 = vsel %vm901, %v890, %v557
        %v908 = vsel %vm901, %v891, %v559
        %v909 = vsel %vm901, %v892, %v561
        %v910 = vsel %vm901, %v893, %v563
        %v911 = vsel %vm901, %v894, %v565
        %v912 = vsel %vm901, %v895, %v567
        %v913 = vsel %vm901, %v896, %v569
        %v914 = vsel %vm901, %v897, %v571
        %v915 = vsel %vm901, %v898, %v573
        %v916 = vsel %vm901, %v899, %v575
        %v917 = vsel %vm901, %v900, %v577
        %vm918 = vcmask 162816
        %v919 = vsel %vm918, %v902, %v611
        %v920 = vsel %vm918, %v903, %v613
        %v921 = vsel %vm918, %v904, %v615
        %v922 = vsel %vm918, %v905, %v617
        %v923 = vsel %vm918, %v906, %v619
        %v924 = vsel %vm918, %v907, %v621
        %v925 = vsel %vm918, %v908, %v623
        %v926 = vsel %vm918, %v909, %v625
        %v927 = vsel %vm918, %v910, %v627
        %v928 = vsel %vm918, %v911, %v629
        %v929 = vsel %vm918, %v912, %v631
        %v930 = vsel %vm918, %v913, %v633
        %v931 = vsel %vm918, %v914, %v635
        %v932 = vsel %vm918, %v915, %v637
        %v933 = vsel %vm918, %v916, %v639
        %v934 = vsel %vm918, %v917, %v641
        %vm935 = vcmask 195584
        %v936 = vsel %vm935, %v919, %v675
        %v937 = vsel %vm935, %v920, %v677
        %v938 = vsel %vm935, %v921, %v679
        %v939 = vsel %vm935, %v922, %v681
        %v940 = vsel %vm935, %v923, %v683
        %v941 = vsel %vm935, %v924, %v685
        %v942 = vsel %vm935, %v925, %v687
        %v943 = vsel %vm935, %v926, %v689
        %v944 = vsel %vm935, %v927, %v691
        %v945 = vsel %vm935, %v928, %v693
        %v946 = vsel %vm935, %v929, %v695
        %v947 = vsel %vm935, %v930, %v697
        %v948 = vsel %vm935, %v931, %v699
        %v949 = vsel %vm935, %v932, %v701
        %v950 = vsel %vm935, %v933, %v703
        %v951 = vsel %vm935, %v934, %v705
        %vm952 = vcmask 228352
        %v953 = vsel %vm952, %v936, %v739
        %v954 = vsel %vm952, %v937, %v741
        %v955 = vsel %vm952, %v938, %v743
        %v956 = vsel %vm952, %v939, %v745
        %v957 = vsel %vm952, %v940, %v747
        %v958 = vsel %vm952, %v941, %v749
        %v959 = vsel %vm952, %v942, %v751
        %v960 = vsel %vm952, %v943, %v753
        %v961 = vsel %vm952, %v944, %v755
        %v962 = vsel %vm952, %v945, %v757
        %v963 = vsel %vm952, %v946, %v759
        %v964 = vsel %vm952, %v947, %v761
        %v965 = vsel %vm952, %v948, %v763
        %v966 = vsel %vm952, %v949, %v765
        %v967 = vsel %vm952, %v950, %v767
        %v968 = vsel %vm952, %v951, %v769
        %vm969 = vcmask 261120
        %v970 = vsel %vm969, %v953, %v803
        %v971 = vsel %vm969, %v954, %v805
        %v972 = vsel %vm969, %v955, %v807
        %v973 = vsel %vm969, %v956, %v809
        %v974 = vsel %vm969, %v957, %v811
        %v975 = vsel %vm969, %v958, %v813
        %v976 = vsel %vm969, %v959, %v815
        %v977 = vsel %vm969, %v960, %v817
        %v978 = vsel %vm969, %v961, %v819
        %v979 = vsel %vm969, %v962, %v821
        %v980 = vsel %vm969, %v963, %v823
        %v981 = vsel %vm969, %v964, %v825
        %v982 = vsel %vm969, %v965, %v827
        %v983 = vsel %vm969, %v966, %v829
        %v984 = vsel %vm969, %v967, %v831
        %v985 = vsel %vm969, %v968, %v833
        %v986 = vpack.c.bf16 %v971, %v970
        %v987 = vpack.c.bf16 %v973, %v972
        %v988 = vpack.c.bf16 %v975, %v974
        %v989 = vpack.c.bf16 %v977, %v976
        %v990 = vpack.c.bf16 %v979, %v978
        %v991 = vpack.c.bf16 %v981, %v980
        %v992 = vpack.c.bf16 %v983, %v982
        %v993 = vpack.c.bf16 %v985, %v984
        %v994 = vld [vmem:[%s1] sm:$0xf]
        %v995 = vld [vmem:[%s1 + $0x4] sm:$0xf]
        %v996 = vld [vmem:[%s1 + $0x8] sm:$0xf]
        %v997 = vld [vmem:[%s1 + $0xc] sm:$0xf]
        %v998 = vld [vmem:[%s1 + $0x10] sm:$0x3]
        %v999 = vld [vmem:[%s2] sm:$0x1]
        %v1001 = vlaneseq
        %v1002 = vshrl.u32 %v1001, 7
        %v1003 = vsub.s32 0, %v1002
        %v1004 = vrot.slane %v999, %v1003
        %v1011 = vunpack.c.l.b16 %v994
        %v1012 = vunpack.c.l.b16 %v995
        %v1013 = vunpack.c.l.b16 %v996
        %v1014 = vunpack.c.l.b16 %v997
        %v1015 = vunpack.c.l.b16 %v998
        %v1016 = vpack.c.b16 %v1012, %v1011
        %v1017 = vpack.c.b16 %v1014, %v1013
        %v1018 = vpack.c.b16 %v1015, %v1015
        %vm1021 = vcmask 293888
        %v1023 = vsel %vm1021, %v986, 0
        %v1026 = vsel %vm1021, %v987, 0
        %v1029 = vsel %vm1021, %v988, 0
        %v1032 = vsel %vm1021, %v989, 0
        %v1035 = vsel %vm1021, %v990, 0
        %v1038 = vsel %vm1021, %v991, 0
        %v1041 = vsel %vm1021, %v992, 0
        %v1044 = vsel %vm1021, %v993, 0
        %vm1046 = vcmask 1041408
        %v1048 = vsel %vm1046, %v1018, 0
        %1050 = vmatprep.subr.bf16.mxu0 0
        %1051 = vmatpush1.bf16.msra.mxu0 %v1016
        %1052 = vmatprep.subr.bf16.mxu0 0
        %1053 = vmatpush1.bf16.msra.mxu0 %v1017
        %1054 = vmatprep.subr.bf16.mxu0 0
        %1055 = vmatpush1.bf16.msra.mxu0 %v1048
        %1056 = vmatprep.subr.bf16.mxu0 0
        %1057 = vmatpush1.bf16.msra.mxu0 0
        %1058 = vmatprep.subr.bf16.mxu0 0
        %1059 = vmatpush1.bf16.msra.mxu0 0
        %1060 = vmatprep.subr.bf16.mxu0 0
        %1061 = vmatpush1.bf16.msra.mxu0 0
        %1062 = vmatprep.subr.bf16.mxu0 0
        %1063 = vmatpush1.bf16.msra.mxu0 0
        %1064 = vmatprep.subr.bf16.mxu0 0
        %1065 = vmatpush1.bf16.msra.mxu0 0
        %1066 = vmatprep.subr.bf16.mxu0 0
        %1067 = vmatpush1.bf16.msra.mxu0 0
        %1068 = vmatprep.subr.bf16.mxu0 0
        %1069 = vmatpush1.bf16.msra.mxu0 0
        %1070 = vmatprep.subr.bf16.mxu0 0
        %1071 = vmatpush1.bf16.msra.mxu0 0
        %1072 = vmatprep.subr.bf16.mxu0 0
        %1073 = vmatpush1.bf16.msra.mxu0 0
        %1074 = vmatprep.subr.bf16.mxu0 0
        %1075 = vmatpush1.bf16.msra.mxu0 0
        %1076 = vmatprep.subr.bf16.mxu0 0
        %1077 = vmatpush1.bf16.msra.mxu0 0
        %1078 = vmatprep.subr.bf16.mxu0 0
        %1079 = vmatpush1.bf16.msra.mxu0 0
        %1080 = vmatprep.subr.bf16.mxu0 0
        %1081 = vmatpush1.bf16.msra.mxu0 0
        %1082 = vmatprep.mubr.bf16.mxu0 0
        %1083 = vmatmul.mubr.bf16.gmra.mrb[0].mxu0 %v1023
        %v1084 = vpop.f32.mrb[0].mxu0
        %v1085 = vadd.f32 %v1004, %v1084
        %v1086 = vpop.f32.mrb[0].mxu0
        %v1087 = vpop.f32.mrb[0].mxu0
        %v1088 = vadd.f32 %v1004, %v1087
        %v1089 = vpop.f32.mrb[0].mxu0
        %1090 = vmatprep.mubr.bf16.mxu0 0
        %1091 = vmatmul.mubr.bf16.gmra.mrb[0].mxu0 %v1026
        %v1092 = vpop.f32.mrb[0].mxu0
        %v1093 = vadd.f32 %v1004, %v1092
        %v1094 = vpop.f32.mrb[0].mxu0
        %v1095 = vpop.f32.mrb[0].mxu0
        %v1096 = vadd.f32 %v1004, %v1095
        %v1097 = vpop.f32.mrb[0].mxu0
        %1098 = vmatprep.mubr.bf16.mxu0 0
        %1099 = vmatmul.mubr.bf16.gmra.mrb[0].mxu0 %v1029
        %v1100 = vpop.f32.mrb[0].mxu0
        %v1101 = vadd.f32 %v1004, %v1100
        %v1102 = vpop.f32.mrb[0].mxu0
        %v1103 = vpop.f32.mrb[0].mxu0
        %v1104 = vadd.f32 %v1004, %v1103
        %v1105 = vpop.f32.mrb[0].mxu0
        %1106 = vmatprep.mubr.bf16.mxu0 0
        %1107 = vmatmul.mubr.bf16.gmra.mrb[0].mxu0 %v1032
        %v1108 = vpop.f32.mrb[0].mxu0
        %v1109 = vadd.f32 %v1004, %v1108
        %v1110 = vpop.f32.mrb[0].mxu0
        %v1111 = vpop.f32.mrb[0].mxu0
        %v1112 = vadd.f32 %v1004, %v1111
        %v1113 = vpop.f32.mrb[0].mxu0
        %1114 = vmatprep.mubr.bf16.mxu0 0
        %1115 = vmatmul.mubr.bf16.gmra.mrb[0].mxu0 %v1035
        %v1116 = vpop.f32.mrb[0].mxu0
        %v1117 = vadd.f32 %v1004, %v1116
        %v1118 = vpop.f32.mrb[0].mxu0
        %v1119 = vpop.f32.mrb[0].mxu0
        %v1120 = vadd.f32 %v1004, %v1119
        %v1121 = vpop.f32.mrb[0].mxu0
        %1122 = vmatprep.mubr.bf16.mxu0 0
        %1123 = vmatmul.mubr.bf16.gmra.mrb[0].mxu0 %v1038
        %v1124 = vpop.f32.mrb[0].mxu0
        %v1125 = vadd.f32 %v1004, %v1124
        %v1126 = vpop.f32.mrb[0].mxu0
        %v1127 = vpop.f32.mrb[0].mxu0
        %v1128 = vadd.f32 %v1004, %v1127
        %v1129 = vpop.f32.mrb[0].mxu0
        %1130 = vmatprep.mubr.bf16.mxu0 0
        %1131 = vmatmul.mubr.bf16.gmra.mrb[0].mxu0 %v1041
        %v1132 = vpop.f32.mrb[0].mxu0
        %v1133 = vadd.f32 %v1004, %v1132
        %v1134 = vpop.f32.mrb[0].mxu0
        %v1135 = vpop.f32.mrb[0].mxu0
        %v1136 = vadd.f32 %v1004, %v1135
        %v1137 = vpop.f32.mrb[0].mxu0
        %1138 = vmatprep.mubr.bf16.mxu0 0
        %1139 = vmatmul.mubr.bf16.gmra.mrb[0].mxu0 %v1044
        %v1140 = vpop.f32.mrb[0].mxu0
        %v1141 = vadd.f32 %v1004, %v1140
        %v1142 = vpop.f32.mrb[0].mxu0
        %v1143 = vpop.f32.mrb[0].mxu0
        %v1144 = vadd.f32 %v1004, %v1143
        %v1145 = vpop.f32.mrb[0].mxu0
        %1146 = vdwg.mxu0
        %vm1147 = vcmp.gt.f32.partialorder %v1085, 0.0
        %vm1148 = vcmp.gt.f32.partialorder %v1088, 0.0
        %vm1149 = vcmp.gt.f32.partialorder %v1093, 0.0
        %vm1150 = vcmp.gt.f32.partialorder %v1096, 0.0
        %vm1151 = vcmp.gt.f32.partialorder %v1101, 0.0
        %vm1152 = vcmp.gt.f32.partialorder %v1104, 0.0
        %vm1153 = vcmp.gt.f32.partialorder %v1109, 0.0
        %vm1154 = vcmp.gt.f32.partialorder %v1112, 0.0
        %vm1155 = vcmp.gt.f32.partialorder %v1117, 0.0
        %vm1156 = vcmp.gt.f32.partialorder %v1120, 0.0
        %vm1157 = vcmp.gt.f32.partialorder %v1125, 0.0
        %vm1158 = vcmp.gt.f32.partialorder %v1128, 0.0
        %vm1159 = vcmp.gt.f32.partialorder %v1133, 0.0
        %vm1160 = vcmp.gt.f32.partialorder %v1136, 0.0
        %vm1161 = vcmp.gt.f32.partialorder %v1141, 0.0
        %vm1162 = vcmp.gt.f32.partialorder %v1144, 0.0
        %v1163 = vmul.f32 %v1085, 0.1
        %v1164 = vmul.f32 %v1088, 0.1
        %v1165 = vmul.f32 %v1093, 0.1
        %v1166 = vmul.f32 %v1096, 0.1
        %v1167 = vmul.f32 %v1101, 0.1
        %v1168 = vmul.f32 %v1104, 0.1
        %v1169 = vmul.f32 %v1109, 0.1
        %v1170 = vmul.f32 %v1112, 0.1
        %v1171 = vmul.f32 %v1117, 0.1
        %v1172 = vmul.f32 %v1120, 0.1
        %v1173 = vmul.f32 %v1125, 0.1
        %v1174 = vmul.f32 %v1128, 0.1
        %v1175 = vmul.f32 %v1133, 0.1
        %v1176 = vmul.f32 %v1136, 0.1
        %v1177 = vmul.f32 %v1141, 0.1
        %v1178 = vmul.f32 %v1144, 0.1
        %v1179 = vsel %vm1147, %v1085, %v1163
        %v1180 = vsel %vm1148, %v1088, %v1164
        %v1181 = vsel %vm1149, %v1093, %v1165
        %v1182 = vsel %vm1150, %v1096, %v1166
        %v1183 = vsel %vm1151, %v1101, %v1167
        %v1184 = vsel %vm1152, %v1104, %v1168
        %v1185 = vsel %vm1153, %v1109, %v1169
        %v1186 = vsel %vm1154, %v1112, %v1170
        %v1187 = vsel %vm1155, %v1117, %v1171
        %v1188 = vsel %vm1156, %v1120, %v1172
        %v1189 = vsel %vm1157, %v1125, %v1173
        %v1190 = vsel %vm1158, %v1128, %v1174
        %v1191 = vsel %vm1159, %v1133, %v1175
        %v1192 = vsel %vm1160, %v1136, %v1176
        %v1193 = vsel %vm1161, %v1141, %v1177
        %v1194 = vsel %vm1162, %v1144, %v1178
        %1195 = vst [vmem:[%s177] sm:$0xff] %v1179
        %1196 = vst [vmem:[%s177 + $0x8] sm:$0xff] %v1180
        %1197 = vst [vmem:[%s177 + $0x10] sm:$0xff] %v1181
        %1198 = vst [vmem:[%s177 + $0x18] sm:$0xff] %v1182
        %1199 = vst [vmem:[%s177 + $0x20] sm:$0xff] %v1183
        %1200 = vst [vmem:[%s177 + $0x28] sm:$0xff] %v1184
        %1201 = vst [vmem:[%s177 + $0x30] sm:$0xff] %v1185
        %1202 = vst [vmem:[%s177 + $0x38] sm:$0xff] %v1186
        %1203 = vst [vmem:[%s177 + $0x40] sm:$0xff] %v1187
        %1204 = vst [vmem:[%s177 + $0x48] sm:$0xff] %v1188
        %1205 = vst [vmem:[%s177 + $0x50] sm:$0xff] %v1189
        %1206 = vst [vmem:[%s177 + $0x58] sm:$0xff] %v1190
        %1207 = vst [vmem:[%s177 + $0x60] sm:$0xff] %v1191
        %1208 = vst [vmem:[%s177 + $0x68] sm:$0xff] %v1192
        %1209 = vst [vmem:[%s177 + $0x70] sm:$0xff] %v1193
        %1210 = vst [vmem:[%s177 + $0x78] sm:$0xff] %v1194
        %s1211 = sand.u32 %s107, 1
        %s1212 = scalar_lea.sflag [#allocation3], %s1211
        %s1213 = sand.u32 %s107, 1
        %s1214 = smul.addr %s1213, 128
        %s1215 = scalar_lea.vmem [#allocation2], %s1214
        // Predicated region
        $region33: #{tpu_custom_call.1} parent=31 // pred_check
          %p1216 = pneg %p117
        $region34: #{tpu_custom_call.1} parent=31 // pred_check_branch
          %1218 = sbr.rel (%p1216) target = $region36
        $region35: #{tpu_custom_call.1} parent=31 // pred_region
          %s1219 = smul.u32 8, %s22
          %s1221 = ssub.s32 2048, 2048
          %1222 = vsyncadd %s1212, %s1221
          %s1223 = smul.addr %s1219, 2
          %s1224 = smul.addr %s21, 32
          %s1225 = sadd.s32 %s1223, %s1224
          %s1226 = smul.addr %s1225, 128
          %s1227 = scalar_lea.hbm %s3, %s1226
          %s1228 = sshll.u32 %s1215, 4
          %s1229 = int_to_ptr.vmem [resolvable:$true] %s1228
          %1234 = dma.vmem_to_hbm [thread:$0]  %s1229, 2048, %s1227, %s1212, 128, 128, 8
        $region36: #{tpu_custom_call.1} parent=31 // pred_fallthru
          _
      $region32: #{tpu_custom_call.1} parent=5 // pred_fallthru
        _
      %p1235 = scmp.le.s32.totalorder 2, %s12
      // Predicated region
      $region37: #{tpu_custom_call.1} parent=5 // pred_check
        %p1236 = pneg %p1235
      $region38: #{tpu_custom_call.1} parent=5 // pred_check_branch
        %1238 = sbr.rel (%p1236) target = $region40
      $region39: #{tpu_custom_call.1} parent=5 // pred_region
        %s1239 = ssub.s32 %s12, 2
        // Predicated region
        $region41: #{tpu_custom_call.1} parent=39 // pred_check
          %p1240 = pneg %p123
        $region42: #{tpu_custom_call.1} parent=39 // pred_check_branch
          %1242 = sbr.rel (%p1240) target = $region44
        $region43: #{tpu_custom_call.1} parent=39 // pred_region
          %s1243 = sand.u32 %s108, 1
          %s1244 = scalar_lea.sflag [#allocation3], %s1243
          %s1245 = sand.u32 %s108, 1
          %s1246 = smul.addr %s1245, 128
          %s1247 = scalar_lea.vmem [#allocation2], %s1246
          %1248 = dma.done %s1244, 2048
        $region44: #{tpu_custom_call.1} parent=39 // pred_fallthru
          _
      $region40: #{tpu_custom_call.1} parent=5 // pred_fallthru
        _
    $region6: #{tpu_custom_call.1} parent=1 // loop_footer
      %s16 = sadd.s32 1, %s12
    $region7: #{tpu_custom_call.1} parent=1 // loop_footer_branch
      %11 = sbr.rel target = $region3
    $region8: #{tpu_custom_call.1} parent=1 // loop_exit
      _
    %1249 = vsyncpa [#allocation3], 1
    %s1250 = scalar_lea.sflag [#allocation3], 1
    %1251 = vsyncpa %s1250, 1

</llo_original>
